<compile_context>
chip_gen: v5e
topology: v5e:2x2
jax: 0.10.0
libtpu: 0.0.40
codegen_flags: <defaults>
</compile_context>

<pallas_src>
import jax
import jax.numpy as jnp
from jax.experimental import pallas as pl
from jax.experimental.pallas import tpu as pltpu


def _conv_matmul_kernel(p_ref, w_ref, b_ref, o_ref):
    # p_ref: (K, tm)    bf16 patches  (output-pixel axis on lanes)
    # w_ref: (Cout, K)  bf16 weights  (resident)
    # b_ref: (Cout, 1)  f32 bias      (resident)
    # o_ref: (Cout, tm) f32 output    (lane-dense store)
    acc = jnp.dot(w_ref[...], p_ref[...], preferred_element_type=jnp.float32)
    o_ref[...] = (acc + b_ref[...]).astype(o_ref.dtype)


def _pick_tile(L, K, Cout, vmem_budget_bytes=8 * 1024 * 1024):
    """Largest lane tile: full axis if it fits the budget, else a 128-multiple cap."""
    def block_bytes(tm):
        # double-buffered bf16 patch block + double-buffered f32 output block
        return 2 * (K * tm * 2) + 2 * (Cout * tm * 4)

    if block_bytes(L) <= vmem_budget_bytes:
        return L                                # full per-sample axis (always legal)
    tm = max(128, (vmem_budget_bytes // (2 * (K * 2 + Cout * 4))) // 128 * 128)
    return min(tm, 4096)                        # keep steps cheap but VMEM-safe on v7x


def downsample_forward(x, weight, bias):
    """Conv3d with kernel (1,3,3), stride (1,3,3), no padding.

    x:      (N, Cin, D, H, W)   float32
    weight: (Cout, Cin, 1, 3, 3)
    bias:   (Cout,)
    returns (N, Cout, D, H//3, W//3) float32
    """
    N, Cin, D, H, W = x.shape
    Cout = weight.shape[0]
    Ho, Wo = H // 3, W // 3
    K = Cin * 9
    L = D * Ho * Wo  # per-sample count of output pixels

    # ---- im2col, transposed so the output-pixel axis is LAST (lane-dense) ----
    # (N,Cin,D,Ho,3,Wo,3) -> (N, Cin, kh, kw, D, Ho, Wo) -> (N, K, L), K ordered (ci,kh,kw).
    xp = x[:, :, :, : Ho * 3, : Wo * 3].reshape(N, Cin, D, Ho, 3, Wo, 3)
    patches = jnp.transpose(xp, (0, 1, 4, 6, 2, 3, 5)).reshape(N, K, L)
    patches = patches.astype(jnp.bfloat16)  # cast fuses into the transpose copy

    # weight (Cout, Cin, 1, 3, 3) -> (Cout, K): pure reshape, same (ci,kh,kw) order.
    w = weight.reshape(Cout, K).astype(jnp.bfloat16)
    b = bias.reshape(Cout, 1).astype(jnp.float32)

    tm = _pick_tile(L, K, Cout)
    n_m = pl.cdiv(L, tm)
    grid = (N, n_m)

    cost = pl.CostEstimate(
        flops=2 * N * L * K * Cout,
        transcendentals=0,
        bytes_accessed=N * K * L * 2 + Cout * K * 2 + Cout * 4 + N * Cout * L * 4,
    )

    out = pl.pallas_call(
        _conv_matmul_kernel,
        out_shape=jax.ShapeDtypeStruct((N, Cout, L), jnp.float32),
        grid_spec=pltpu.PrefetchScalarGridSpec(
            num_scalar_prefetch=0,
            grid=grid,
            in_specs=[
                pl.BlockSpec((None, K, tm), lambda n, m: (n, 0, m)),   # patches
                pl.BlockSpec((Cout, K), lambda n, m: (0, 0)),          # weights (resident)
                pl.BlockSpec((Cout, 1), lambda n, m: (0, 0)),          # bias (resident)
            ],
            out_specs=pl.BlockSpec((None, Cout, tm), lambda n, m: (n, 0, m)),
        ),
        compiler_params=pltpu.CompilerParams(
            dimension_semantics=("parallel", "parallel"),
        ),
        cost_estimate=cost,
    )(patches, w, b)

    # (N, Cout, D*Ho*Wo) -> (N, Cout, D, Ho, Wo): free reshape, no transpose pass.
    return out.reshape(N, Cout, D, Ho, Wo)


def _reference(x, weight, bias):
    out = jax.lax.conv_general_dilated(
        x, weight,
        window_strides=(1, 3, 3),
        padding="VALID",
        dimension_numbers=("NCDHW", "OIDHW", "NCDHW"),
    )
    return out + bias.reshape(1, -1, 1, 1, 1)


if __name__ == "__main__":
    key = jax.random.PRNGKey(0)
    k_x, k_w, k_b = jax.random.split(key, 3)

    # Small shapes consistent with the module: N=2, Cin=4, Cout=8, D=4, H=W=12.
    N, Cin, Cout, D, H, W = 2, 4, 8, 4, 12, 12

    x = jax.random.normal(k_x, (N, Cin, D, H, W), dtype=jnp.float32)
    fan_in = Cin * 1 * 3 * 3
    bound = 1.0 / (fan_in ** 0.5)
    weight = jax.random.uniform(k_w, (Cout, Cin, 1, 3, 3),
                                minval=-bound, maxval=bound, dtype=jnp.float32)
    bias = jax.random.uniform(k_b, (Cout,), minval=-bound, maxval=bound,
                              dtype=jnp.float32)

    fwd = jax.jit(downsample_forward)
    out = jax.block_until_ready(fwd(x, weight, bias))

    assert out.shape == (N, Cout, D, H // 3, W // 3), out.shape

    # Tight check vs. a reference built from the same bf16-rounded inputs
    # (isolates kernel math from the intentional bf16 input quantization).
    x_q = x.astype(jnp.bfloat16).astype(jnp.float32)
    w_q = weight.astype(jnp.bfloat16).astype(jnp.float32)
    ref_q = _reference(x_q, w_q, bias)
    assert jnp.allclose(out, ref_q, atol=2e-3, rtol=2e-3), float(
        jnp.max(jnp.abs(out - ref_q)))

    # Loose check vs. the full-f32 reference (bf16 input rounding only).
    ref = _reference(x, weight, bias)
    assert jnp.allclose(out, ref, atol=5e-2, rtol=5e-2), float(
        jnp.max(jnp.abs(out - ref)))

    print("KERNEL_OK")
</pallas_src>

<mosaic_0001>
module attributes {stable_mosaic.version = 11 : i64} {
  func.func @_conv_matmul_kernel(%arg0: i32, %arg1: i32, %arg2: memref<1x36x64xbf16, #tpu.memory_space<vmem>>, %arg3: memref<8x36xbf16, #tpu.memory_space<vmem>>, %arg4: memref<8x1xf32, #tpu.memory_space<vmem>>, %arg5: memref<1x8x64xf32, #tpu.memory_space<vmem>>) attributes {dimension_semantics = [#tpu.dimension_semantics<parallel>, #tpu.dimension_semantics<parallel>], iteration_bounds = array<i64: 2, 1>, scalar_prefetch = 0 : i64, scratch_operands = 0 : i64, tpu.core_type = #tpu.core_type<tc>, window_params = [{transform_indices = @transform_0, window_bounds = array<i64: 1, 36, 64>}, {pipeline_mode = #tpu.pipeline_mode<synchronous>, transform_indices = @transform_1, window_bounds = array<i64: 8, 36>}, {pipeline_mode = #tpu.pipeline_mode<synchronous>, transform_indices = @transform_2, window_bounds = array<i64: 8, 1>}, {transform_indices = @transform_3, window_bounds = array<i64: 1, 8, 64>}]} {
    %c0 = arith.constant 0 : index
    %c0_0 = arith.constant 0 : index
    %0 = vector.load %arg3[%c0, %c0_0] : memref<8x36xbf16, #tpu.memory_space<vmem>>, vector<8x36xbf16>
    %c0_1 = arith.constant 0 : index
    %c0_2 = arith.constant 0 : index
    %c0_3 = arith.constant 0 : index
    %1 = vector.load %arg2[%c0_1, %c0_2, %c0_3] : memref<1x36x64xbf16, #tpu.memory_space<vmem>>, vector<1x36x64xbf16>
    %2 = vector.shape_cast %1 : vector<1x36x64xbf16> to vector<36x64xbf16>
    %cst = arith.constant dense<0.000000e+00> : vector<8x64xf32>
    %3 = tpu.matmul %0, %2, %cst {dimension_numbers = #tpu.dot_dimension_numbers<[1], [0], [0], [1], [0, 0, 1, 1], [], []>} : vector<8x36xbf16>, vector<36x64xbf16>, vector<8x64xf32> -> vector<8x64xf32>
    %c0_4 = arith.constant 0 : index
    %c0_5 = arith.constant 0 : index
    %4 = vector.load %arg4[%c0_4, %c0_5] : memref<8x1xf32, #tpu.memory_space<vmem>>, vector<8x1xf32>
    %5 = vector.broadcast %4 : vector<8x1xf32> to vector<8x64xf32>
    %6 = arith.addf %3, %5 : vector<8x64xf32>
    %c0_6 = arith.constant 0 : index
    %c0_7 = arith.constant 0 : index
    %c0_8 = arith.constant 0 : index
    %7 = vector.load %arg5[%c0_6, %c0_7, %c0_8] : memref<1x8x64xf32, #tpu.memory_space<vmem>>, vector<1x8x64xf32>
    %8 = vector.shape_cast %7 : vector<1x8x64xf32> to vector<8x64xf32>
    %9 = vector.shape_cast %6 : vector<8x64xf32> to vector<1x8x64xf32>
    tpu.vector_store %arg5[%c0_6, %c0_7, %c0_8], %9 {strides = array<i32>} : memref<1x8x64xf32, #tpu.memory_space<vmem>>, vector<1x8x64xf32>,
    return
  }
  func.func @transform_0(%arg0: i32, %arg1: i32) -> (i32, i32, i32) {
    %c0_i32 = arith.constant 0 : i32
    %c0_i32_0 = arith.constant 0 : i32
    return %arg0, %c0_i32, %arg1 : i32, i32, i32
  }
  func.func @transform_1(%arg0: i32, %arg1: i32) -> (i32, i32) {
    %c0_i32 = arith.constant 0 : i32
    %c0_i32_0 = arith.constant 0 : i32
    %c0_i32_1 = arith.constant 0 : i32
    return %c0_i32, %c0_i32_0 : i32, i32
  }
  func.func @transform_2(%arg0: i32, %arg1: i32) -> (i32, i32) {
    %c0_i32 = arith.constant 0 : i32
    %c0_i32_0 = arith.constant 0 : i32
    %c0_i32_1 = arith.constant 0 : i32
    return %c0_i32, %c0_i32_0 : i32, i32
  }
  func.func @transform_3(%arg0: i32, %arg1: i32) -> (i32, i32, i32) {
    %c0_i32 = arith.constant 0 : i32
    %c0_i32_0 = arith.constant 0 : i32
    return %arg0, %c0_i32, %arg1 : i32, i32, i32
  }
}

</mosaic_0001>

<llo_original>
// kernel: downsample_forward.1
$region0: #{downsample_forward.1}
  #allocation0 [shape = 'u32[]', space=smem, size = 0x4, offset = 0x4, fixed_abs, tag = 'smem constant byte address 0x4 - core index']
  #allocation1 [shape = 'u32[72,128]{1,0:T(1,128)}', space=vmem, size = 0x9000, scoped, tag = 'internal scratch']
  %s0 = inlined_call_operand.vmem [shape: bf16[2,36,64], index: 0, kind: input, shape index: {}]
  %s1 = inlined_call_operand.vmem [shape: bf16[8,36], index: 1, kind: input, shape index: {}]
  %s2 = inlined_call_operand.vmem [shape: f32[8,1], index: 2, kind: input, shape index: {}]
  %s3 = inlined_call_operand.vmem [shape: f32[2,8,64], index: 3, kind: output, shape index: {}]
  %s4 = sld [smem:[#allocation0]]
  $region45: #{downsample_forward.1} parent=0
    _
  %s6 = ssub.s32 1, %s4
  %s7 = scalar_select 0, %s6, %s4
  loop: start=0, step=1, limit=4
  $region2: #{downsample_forward.1} parent=0 // loop_pre_header
    _
  $region3: #{downsample_forward.1} parent=0 // loop_header
    %s9 = sphi 0, %s13
    %p10 = scmp.ge.s32.totalorder %s9, 4
    %s16 = sphi 0, %s28
    %s17 = sphi 0, %s24
    %s18 = sphi 0, %s16
    %s19 = sphi 0, %s17
    %s20 = sphi 0, %s18
    %s21 = sphi 0, %s19
    %s33 = sphi 0, %s35
    %s36 = sphi 0, %s33
    %s37 = sphi 0, %s36
    %s53 = sphi 0, %s37
    %s57 = sphi 0, %s57
    %s59 = sphi 0, %s57
    %s60 = sphi 0, %s59
    %s74 = sphi 0, %s60
    %s78 = sphi 0, %s78
    %s80 = sphi 0, %s78
    %s81 = sphi 0, %s80
    %s95 = sphi 0, %s81
    %s103 = sphi 0, %s105
    %s106 = sphi 0, %s103
    %s107 = sphi 0, %s106
    %s123 = sphi 0, %s107
  $region4: #{downsample_forward.1} parent=0 // loop_header_branch
    %12 = sbr.rel (%p10) target = $region8
  $region5: #{downsample_forward.1} parent=0 // loop_body
    %s14 = ssub.s32 %s9, 1
    %s15 = ssub.s32 %s9, 2
    %s22 = sadd.s32 1, %s17
    %p23 = scmp.ge.s32.totalorder %s22, 1
    %s24 = scalar_select %p23, 0, %s22
    %s25 = sadd.s32 1, %s16
    %s26 = scalar_select %p23, %s25, %s16
    %p27 = scmp.ge.s32.totalorder %s26, 2
    %s28 = scalar_select %p27, 0, %s26
    %s29 = ssub.s32 %s16, %s28
    %s30 = ssub.s32 %s17, %s24
    %s31 = sor.u32 %s29, %s30
    %p32 = scmp.eq.s32.totalorder %s31, 0
    %s34 = sadd.s32 %s33, 1
    %s35 = scalar_select %p32, %s33, %s34
    %p38 = pneg %p32
    %p39 = scmp.eq.s32.totalorder %s9, 1
    %p40 = por %p38, %p39
    %p41 = scmp.ne.s32.totalorder %s33, %s36
    %p42 = scmp.eq.s32.totalorder %s9, 0
    %p43 = por %p41, %p42
    %p44 = scmp.ne.s32.totalorder %s33, %s36
    %p45 = scmp.eq.s32.totalorder %s14, 1
    %p46 = por %p44, %p45
    %p47 = scmp.ne.s32.totalorder %s36, %s37
    %p48 = scmp.eq.s32.totalorder %s14, 0
    %p49 = por %p47, %p48
    %p50 = scmp.ne.s32.totalorder %s36, %s37
    %p51 = scmp.eq.s32.totalorder %s15, 1
    %p52 = por %p50, %p51
    %p54 = scmp.ne.s32.totalorder %s37, %s53
    %p55 = scmp.eq.s32.totalorder %s15, 0
    %p56 = por %p54, %p55
    %s58 = sadd.s32 %s57, 1
    %p61 = scmp.eq.s32.totalorder %s9, 1
    %p62 = scmp.ne.s32.totalorder %s57, %s59
    %p63 = scmp.eq.s32.totalorder %s9, 0
    %p64 = por %p62, %p63
    %p65 = scmp.ne.s32.totalorder %s57, %s59
    %p66 = scmp.eq.s32.totalorder %s14, 1
    %p67 = por %p65, %p66
    %p68 = scmp.ne.s32.totalorder %s59, %s60
    %p69 = scmp.eq.s32.totalorder %s14, 0
    %p70 = por %p68, %p69
    %p71 = scmp.ne.s32.totalorder %s59, %s60
    %p72 = scmp.eq.s32.totalorder %s15, 1
    %p73 = por %p71, %p72
    %p75 = scmp.ne.s32.totalorder %s60, %s74
    %p76 = scmp.eq.s32.totalorder %s15, 0
    %p77 = por %p75, %p76
    %s79 = sadd.s32 %s78, 1
    %p82 = scmp.eq.s32.totalorder %s9, 1
    %p83 = scmp.ne.s32.totalorder %s78, %s80
    %p84 = scmp.eq.s32.totalorder %s9, 0
    %p85 = por %p83, %p84
    %p86 = scmp.ne.s32.totalorder %s78, %s80
    %p87 = scmp.eq.s32.totalorder %s14, 1
    %p88 = por %p86, %p87
    %p89 = scmp.ne.s32.totalorder %s80, %s81
    %p90 = scmp.eq.s32.totalorder %s14, 0
    %p91 = por %p89, %p90
    %p92 = scmp.ne.s32.totalorder %s80, %s81
    %p93 = scmp.eq.s32.totalorder %s15, 1
    %p94 = por %p92, %p93
    %p96 = scmp.ne.s32.totalorder %s81, %s95
    %p97 = scmp.eq.s32.totalorder %s15, 0
    %p98 = por %p96, %p97
    %s99 = ssub.s32 %s16, %s28
    %s100 = ssub.s32 %s17, %s24
    %s101 = sor.u32 %s99, %s100
    %p102 = scmp.eq.s32.totalorder %s101, 0
    %s104 = sadd.s32 %s103, 1
    %s105 = scalar_select %p102, %s103, %s104
    %p108 = pneg %p102
    %p109 = scmp.eq.s32.totalorder %s9, 1
    %p110 = por %p108, %p109
    %p111 = scmp.ne.s32.totalorder %s103, %s106
    %p112 = scmp.eq.s32.totalorder %s9, 0
    %p113 = por %p111, %p112
    %p114 = scmp.ne.s32.totalorder %s103, %s106
    %p115 = scmp.eq.s32.totalorder %s14, 1
    %p116 = por %p114, %p115
    %p117 = scmp.ne.s32.totalorder %s106, %s107
    %p118 = scmp.eq.s32.totalorder %s14, 0
    %p119 = por %p117, %p118
    %p120 = scmp.ne.s32.totalorder %s106, %s107
    %p121 = scmp.eq.s32.totalorder %s15, 1
    %p122 = por %p120, %p121
    %p124 = scmp.ne.s32.totalorder %s107, %s123
    %p125 = scmp.eq.s32.totalorder %s15, 0
    %p126 = por %p124, %p125
    %p127 = scmp.le.s32.totalorder 1, %s9
    %p128 = scmp.lt.s32.totalorder %s9, 3
    %p129 = pnand %p127, %p128
    %p130 = pneg %p129
    // Predicated region
    $region9: #{downsample_forward.1} parent=5 // pred_check
      _
    $region10: #{downsample_forward.1} parent=5 // pred_check_branch
      %132 = sbr.rel (%p129) target = $region12
    $region11: #{downsample_forward.1} parent=5 // pred_region
      %s133 = ssub.s32 %s9, 1
      // Predicated region
      $region13: #{downsample_forward.1} parent=11 // pred_check
        %p134 = pneg %p70
      $region14: #{downsample_forward.1} parent=11 // pred_check_branch
        %136 = sbr.rel (%p134) target = $region16
      $region15: #{downsample_forward.1} parent=11 // pred_region
        _
      $region16: #{downsample_forward.1} parent=11 // pred_fallthru
        _
      // Predicated region
      $region17: #{downsample_forward.1} parent=11 // pred_check
        %p137 = pneg %p91
      $region18: #{downsample_forward.1} parent=11 // pred_check_branch
        %139 = sbr.rel (%p137) target = $region20
      $region19: #{downsample_forward.1} parent=11 // pred_region
        _
      $region20: #{downsample_forward.1} parent=11 // pred_fallthru
        _
    $region12: #{downsample_forward.1} parent=5 // pred_fallthru
      _
    %p140 = scmp.lt.s32.totalorder %s9, 2
    // Predicated region
    $region21: #{downsample_forward.1} parent=5 // pred_check
      %p141 = pneg %p140
    $region22: #{downsample_forward.1} parent=5 // pred_check_branch
      %143 = sbr.rel (%p141) target = $region24
    $region23: #{downsample_forward.1} parent=5 // pred_region
      // Predicated region
      $region25: #{downsample_forward.1} parent=23 // pred_check
        %p144 = pneg %p43
      $region26: #{downsample_forward.1} parent=23 // pred_check_branch
        %146 = sbr.rel (%p144) target = $region28
      $region27: #{downsample_forward.1} parent=23 // pred_region
        %p147 = scmp.lt.s32.totalorder %s16, 1
        %s148 = scalar_select %p147, %s16, 1
        %p149 = scmp.lt.s32.totalorder %s17, 0
        %s150 = scalar_select %p149, %s17, 0
        %s151 = smul.addr %s148, 5
        %s152 = sadd.s32 %s150, %s151
        %s153 = smul.addr %s152, 4
        %s154 = scalar_lea.vmem %s0, %s153
      $region28: #{downsample_forward.1} parent=23 // pred_fallthru
        _
    $region24: #{downsample_forward.1} parent=5 // pred_fallthru
      _
    %p155 = scmp.le.s32.totalorder 1, %s9
    %p156 = scmp.lt.s32.totalorder %s9, 3
    %p157 = pnand %p155, %p156
    %p158 = pneg %p157
    // Predicated region
    $region29: #{downsample_forward.1} parent=5 // pred_check
      _
    $region30: #{downsample_forward.1} parent=5 // pred_check_branch
      %160 = sbr.rel (%p157) target = $region32
    $region31: #{downsample_forward.1} parent=5 // pred_region
      %s161 = ssub.s32 %s9, 1
      %p162 = scmp.lt.s32.totalorder %s18, 1
      %s163 = scalar_select %p162, %s18, 1
      %p164 = scmp.lt.s32.totalorder %s19, 0
      %s165 = scalar_select %p164, %s19, 0
      %s166 = smul.addr %s163, 5
      %s167 = sadd.s32 %s165, %s166
      %s168 = smul.addr %s167, 4
      %s169 = scalar_lea.vmem %s0, %s168
      %p170 = pneg %p49
      %p171 = pneg %p46
      %p172 = pneg %p70
      %p173 = pneg %p67
      %p174 = pneg %p91
      %p175 = pneg %p88
      %p176 = pneg %p119
      %p177 = pneg %p116
      %p178 = scmp.lt.s32.totalorder %s18, 1
      %s179 = scalar_select %p178, %s18, 1
      %p180 = scmp.lt.s32.totalorder %s19, 0
      %s181 = scalar_select %p180, %s19, 0
      %s182 = sadd.s32 %s181, %s179
      %s183 = smul.addr %s182, 8
      %s184 = scalar_lea.vmem %s3, %s183
      %p185 = scmp.lt.s32.totalorder %s18, 1
      %s186 = scalar_select %p185, %s18, 1
      %p187 = scmp.lt.s32.totalorder %s19, 0
      %s188 = scalar_select %p187, %s19, 0
      %s189 = smul.addr %s186, 5
      %s190 = sadd.s32 %s188, %s189
      %s191 = smul.addr %s190, 4
      %s192 = scalar_lea.vmem %s0, %s191
      %p193 = scmp.lt.s32.totalorder %s18, 1
      %s194 = scalar_select %p193, %s18, 1
      %p195 = scmp.lt.s32.totalorder %s19, 0
      %s196 = scalar_select %p195, %s19, 0
      %s197 = sadd.s32 %s196, %s194
      %s198 = smul.addr %s197, 8
      %s199 = scalar_lea.vmem %s3, %s198
      %v201 = vld [vmem:[%s1] sm:$0xf]
      %v202 = vld [vmem:[%s192] sm:$0xf]
      %v203 = vld [vmem:[%s192 + $0x4] sm:$0xf]
      %v204 = vld [vmem:[%s192 + $0x8] sm:$0xf]
      %v205 = vld [vmem:[%s192 + $0xc] sm:$0xf]
      %v206 = vld [vmem:[%s192 + $0x10] sm:$0x3]
      %v207 = vld [vmem:[%s2] sm:$0xff]
      %209 = vset.pattern.permute.xlu0 0
      %210 = vperm.xlu0 %209, %v207
      %v211 = vpop.permute.xlu0 %210
      %v218 = vunpack.c.l.b16 %v202
      %v219 = vunpack.c.l.b16 %v203
      %v220 = vunpack.c.l.b16 %v204
      %v221 = vunpack.c.l.b16 %v205
      %v222 = vunpack.c.l.b16 %v206
      %v223 = vpack.c.b16 %v219, %v218
      %v224 = vpack.c.b16 %v221, %v220
      %v225 = vpack.c.b16 %v222, %v222
      %vm228 = vcmask 293888
      %v230 = vsel %vm228, %v201, 0
      %vm232 = vcmask 1041408
      %v234 = vsel %vm232, %v225, 0
      %236 = vmatpush.bf16.msra.mxu0 0
      %237 = vmatpush.bf16.msra.mxu0 0
      %238 = vmatpush.bf16.msra.mxu0 0
      %239 = vmatpush.bf16.msra.mxu0 0
      %240 = vmatpush.bf16.msra.mxu0 0
      %241 = vmatpush.bf16.msra.mxu0 %v234
      %242 = vmatpush.bf16.msra.mxu0 %v224
      %243 = vmatpush.bf16.msra.mxu0 %v223
      %244 = vmatmul.bf16.gmra.mxu0 %v230
      %v245 = vpop.f32.mrf.mxu0
      %v246 = vadd.f32 %v211, %v245
      %v247 = vpop.f32.mrf.mxu0
      %248 = vdwg.mxu0
      %vm249 = vcmask 523264
      %250 = vst.msk [vmem:[%s199] sm:$0xff] %vm249, %v246
      %p251 = scmp.lt.s32.totalorder %s18, 1
      %s252 = scalar_select %p251, %s18, 1
      %p253 = scmp.lt.s32.totalorder %s19, 0
      %s254 = scalar_select %p253, %s19, 0
      %s255 = sadd.s32 %s254, %s252
      %s256 = smul.addr %s255, 8
      %s257 = scalar_lea.vmem %s3, %s256
      // Predicated region
      $region33: #{downsample_forward.1} parent=31 // pred_check
        %p258 = pneg %p116
      $region34: #{downsample_forward.1} parent=31 // pred_check_branch
        %260 = sbr.rel (%p258) target = $region36
      $region35: #{downsample_forward.1} parent=31 // pred_region
        _
      $region36: #{downsample_forward.1} parent=31 // pred_fallthru
        _
    $region32: #{downsample_forward.1} parent=5 // pred_fallthru
      _
    %p261 = scmp.le.s32.totalorder 2, %s9
    // Predicated region
    $region37: #{downsample_forward.1} parent=5 // pred_check
      %p262 = pneg %p261
    $region38: #{downsample_forward.1} parent=5 // pred_check_branch
      %264 = sbr.rel (%p262) target = $region40
    $region39: #{downsample_forward.1} parent=5 // pred_region
      %s265 = ssub.s32 %s9, 2
      // Predicated region
      $region41: #{downsample_forward.1} parent=39 // pred_check
        %p266 = pneg %p122
      $region42: #{downsample_forward.1} parent=39 // pred_check_branch
        %268 = sbr.rel (%p266) target = $region44
      $region43: #{downsample_forward.1} parent=39 // pred_region
        %p269 = scmp.lt.s32.totalorder %s20, 1
        %s270 = scalar_select %p269, %s20, 1
        %p271 = scmp.lt.s32.totalorder %s21, 0
        %s272 = scalar_select %p271, %s21, 0
        %s273 = sadd.s32 %s272, %s270
        %s274 = smul.addr %s273, 8
        %s275 = scalar_lea.vmem %s3, %s274
      $region44: #{downsample_forward.1} parent=39 // pred_fallthru
        _
    $region40: #{downsample_forward.1} parent=5 // pred_fallthru
      _
  $region6: #{downsample_forward.1} parent=0 // loop_footer
    %s13 = sadd.s32 1, %s9
  $region7: #{downsample_forward.1} parent=0 // loop_footer_branch
    %8 = sbr.rel target = $region3
  $region8: #{downsample_forward.1} parent=0 // loop_exit
    _

</llo_original>
